<compile_context>
chip_gen: v7x
topology: tpu7x:2x2x1
jax: 0.10.0
libtpu: 0.0.40
codegen_flags: <defaults>
</compile_context>

<pallas_src>
import functools

import jax
import jax.numpy as jnp
from jax.experimental import pallas as pl
from jax.experimental.pallas import tpu as pltpu


def _round_up(x, m):
    return ((x + m - 1) // m) * m


def _pick_lane_tile(l_pad, cap):
    """Largest 128-multiple divisor of l_pad that is <= cap."""
    n = l_pad // 128
    best = 1
    for d in range(1, n + 1):
        if n % d == 0 and d * 128 <= cap:
            best = d
    return best * 128


# -----------------------------------------------------------------------------
# Kernel: one grid step == (one batch element, one L-tile), ALL heads fused.
# -----------------------------------------------------------------------------
def _parallel_block_kernel(depth, has_y, *refs):
    refs = list(refs)
    x_ref = refs.pop(0)                      # (HI, TL) f32
    w0_ref = refs.pop(0)                     # (HN, HI) bf16 block-diag
    wrest_ref = refs.pop(0) if depth > 1 else None   # (depth-1, HN, HN) bf16
    wb_ref = refs.pop(0)                     # (HI, HN) bf16 block-diag
    wf_ref = refs.pop(0)                     # (HO, HN) bf16 block-diag
    b0_ref = refs.pop(0)                     # (HN, 1) f32
    brest_ref = refs.pop(0) if depth > 1 else None   # (depth-1, HN, 1) f32
    bb_ref = refs.pop(0)                     # (HI, 1) f32
    bf_ref = refs.pop(0)                     # (HO, 1) f32
    y_ref = refs.pop(0) if has_y else None   # (HO, TL) f32
    out_xb_ref, out_f_ref = refs

    x = x_ref[...]                           # keep f32 copy for the residual

    # basic_block layer 0 (all heads at once; block-diagonal weight)
    a = jnp.dot(w0_ref[...], x.astype(jnp.bfloat16),
                preferred_element_type=jnp.float32)
    a = jnp.maximum(a + b0_ref[...], 0.0)

    # basic_block layers 1..depth-1
    if depth > 1:
        for layer in range(depth - 1):
            a = jnp.dot(wrest_ref[layer], a.astype(jnp.bfloat16),
                        preferred_element_type=jnp.float32)
            a = jnp.maximum(a + brest_ref[layer], 0.0)

    a16 = a.astype(jnp.bfloat16)
    b = jnp.dot(wb_ref[...], a16, preferred_element_type=jnp.float32) + bb_ref[...]
    f = jnp.dot(wf_ref[...], a16, preferred_element_type=jnp.float32) + bf_ref[...]

    out_xb_ref[...] = x - b                  # (HI, TL) f32
    if has_y:
        out_f_ref[...] = y_ref[...] + f      # fused residual add
    else:
        out_f_ref[...] = f


def _run_pallas(x, y, w0, wrest, wb, wf, b0, brest, bb, bf, depth, tl):
    B, HI, L_pad = x.shape
    HN = w0.shape[0]
    HO = wf.shape[0]
    num_t = L_pad // tl
    has_y = y is not None

    in_specs = [
        # activation tile: lane-dense (HI, TL), batch dim squeezed
        pl.BlockSpec((None, HI, tl), lambda b, t: (b, 0, t)),
        # weights/biases: constant index maps -> DMA'd once, VMEM-resident
        pl.BlockSpec((HN, HI), lambda b, t: (0, 0)),
    ]
    args = [x, w0]
    if depth > 1:
        in_specs.append(pl.BlockSpec((depth - 1, HN, HN), lambda b, t: (0, 0, 0)))
        args.append(wrest)
    in_specs += [
        pl.BlockSpec((HI, HN), lambda b, t: (0, 0)),
        pl.BlockSpec((HO, HN), lambda b, t: (0, 0)),
        pl.BlockSpec((HN, 1), lambda b, t: (0, 0)),
    ]
    args += [wb, wf, b0]
    if depth > 1:
        in_specs.append(pl.BlockSpec((depth - 1, HN, 1), lambda b, t: (0, 0, 0)))
        args.append(brest)
    in_specs += [
        pl.BlockSpec((HI, 1), lambda b, t: (0, 0)),
        pl.BlockSpec((HO, 1), lambda b, t: (0, 0)),
    ]
    args += [bb, bf]
    if has_y:
        in_specs.append(pl.BlockSpec((None, HO, tl), lambda b, t: (b, 0, t)))
        args.append(y)

    out_specs = [
        pl.BlockSpec((None, HI, tl), lambda b, t: (b, 0, t)),
        pl.BlockSpec((None, HO, tl), lambda b, t: (b, 0, t)),
    ]
    out_shape = [
        jax.ShapeDtypeStruct((B, HI, L_pad), jnp.float32),
        jax.ShapeDtypeStruct((B, HO, L_pad), jnp.float32),
    ]

    kernel = functools.partial(_parallel_block_kernel, depth, has_y)
    return pl.pallas_call(
        kernel,
        grid=(B, num_t),
        in_specs=in_specs,
        out_specs=out_specs,
        out_shape=out_shape,
        compiler_params=pltpu.CompilerParams(
            dimension_semantics=("parallel", "parallel")),
    )(*args)


# -----------------------------------------------------------------------------
# Parameter handling (per-head params, packed to block-diagonal for the kernel)
# -----------------------------------------------------------------------------
def init_params(key, inner_dim, out_dim, input_dim, heads, depth):
    ks = jax.random.split(key, 8)
    s = 0.1
    p = {
        "heads": heads,
        "depth": depth,
        "w0": s * jax.random.normal(ks[0], (heads, inner_dim, input_dim), jnp.float32),
        "b0": s * jax.random.normal(ks[1], (heads, inner_dim, 1), jnp.float32),
        "wb": s * jax.random.normal(ks[4], (heads, input_dim, inner_dim), jnp.float32),
        "bb": s * jax.random.normal(ks[5], (heads, input_dim, 1), jnp.float32),
        "wf": s * jax.random.normal(ks[6], (heads, out_dim, inner_dim), jnp.float32),
        "bf": s * jax.random.normal(ks[7], (heads, out_dim, 1), jnp.float32),
    }
    if depth > 1:
        p["wrest"] = s * jax.random.normal(
            ks[2], (depth - 1, heads, inner_dim, inner_dim), jnp.float32)
        p["brest"] = s * jax.random.normal(
            ks[3], (depth - 1, heads, inner_dim, 1), jnp.float32)
    return p


def _block_diag(per_head):
    """(H, r, c) per-head weights -> (H*r, H*c) block-diagonal matrix."""
    H, r, c = per_head.shape
    eye = jnp.eye(H, dtype=per_head.dtype)
    return (per_head[:, :, None, :] * eye[:, None, :, None]).reshape(H * r, H * c)


def _pack_params(params):
    heads, depth = params["heads"], params["depth"]
    inner = params["w0"].shape[1]
    input_dim = params["w0"].shape[2]
    out_dim = params["wf"].shape[1]

    w0 = _block_diag(params["w0"]).astype(jnp.bfloat16)        # (HN, HI)
    wb = _block_diag(params["wb"]).astype(jnp.bfloat16)        # (HI, HN)
    wf = _block_diag(params["wf"]).astype(jnp.bfloat16)        # (HO, HN)
    b0 = params["b0"].reshape(heads * inner, 1)
    bb = params["bb"].reshape(heads * input_dim, 1)
    bf = params["bf"].reshape(heads * out_dim, 1)
    wrest = brest = None
    if depth > 1:
        wrest = jnp.stack(
            [_block_diag(params["wrest"][l]) for l in range(depth - 1)]
        ).astype(jnp.bfloat16)                                 # (depth-1, HN, HN)
        brest = params["brest"].reshape(depth - 1, heads * inner, 1)
    return w0, wrest, wb, wf, b0, brest, bb, bf


def parallel_block_forward(params, x, *, lane_tile=2048):
    """x: (B, heads*input_dim, L) in PyTorch NCL layout, or tuple (x, y)."""
    y = None
    if isinstance(x, tuple):
        x, y = x[0], x[1]

    heads = params["heads"]
    depth = params["depth"]
    B, C, L = x.shape
    assert C % heads == 0, "channel dim must be divisible by heads"

    w0, wrest, wb, wf, b0, brest, bb, bf = _pack_params(params)

    # Pad L only to the next multiple of 128; pick a lane tile that divides it
    # exactly (no ragged tail blocks, <=127 dead columns).
    L_pad = _round_up(L, 128)
    tl = _pick_lane_tile(L_pad, max(128, lane_tile))
    if L_pad != L:
        x = jnp.pad(x, ((0, 0), (0, 0), (0, L_pad - L)))
        if y is not None:
            y = jnp.pad(y, ((0, 0), (0, 0), (0, L_pad - L)))

    xb, f = _run_pallas(x, y, w0, wrest, wb, wf, b0, brest, bb, bf, depth, tl)

    if L_pad != L:
        xb = xb[..., :L]
        f = f[..., :L]
    return xb, f   # f already includes +y when a tuple was passed


# -----------------------------------------------------------------------------
# Pure-JAX f32 reference (verification only).
# -----------------------------------------------------------------------------
def _reference_forward(params, x):
    heads, depth = params["heads"], params["depth"]
    B, C, L = x.shape
    input_dim = C // heads
    out_dim = params["wf"].shape[1]
    xg = (x.reshape(B, heads, input_dim, L)
           .transpose(1, 2, 0, 3)
           .reshape(heads, input_dim, B * L))
    a = jnp.maximum(jnp.einsum("hoi,hib->hob", params["w0"], xg) + params["b0"], 0.0)
    if depth > 1:
        for i in range(depth - 1):
            a = jnp.maximum(
                jnp.einsum("hoi,hib->hob", params["wrest"][i], a) + params["brest"][i],
                0.0)
    b = jnp.einsum("hoi,hib->hob", params["wb"], a) + params["bb"]
    f = jnp.einsum("hoi,hib->hob", params["wf"], a) + params["bf"]
    xb = (xg - b).reshape(heads, input_dim, B, L).transpose(2, 0, 1, 3).reshape(B, C, L)
    ff = f.reshape(heads, out_dim, B, L).transpose(2, 0, 1, 3).reshape(B, heads * out_dim, L)
    return xb, ff


if __name__ == "__main__":
    B, heads, input_dim, inner_dim, out_dim, depth, L = 2, 2, 8, 16, 8, 4, 256

    key = jax.random.PRNGKey(0)
    pkey, xkey, ykey = jax.random.split(key, 3)
    params = init_params(pkey, inner_dim, out_dim, input_dim, heads, depth)
    x = jax.random.normal(xkey, (B, heads * input_dim, L), jnp.float32)

    out_xb, out_f = parallel_block_forward(params, x)
    jax.block_until_ready(out_xb)
    jax.block_until_ready(out_f)

    ref_xb, ref_f = _reference_forward(params, x)
    # bf16 MXU operands -> loosened tolerance vs the f32 reference.
    assert jnp.allclose(out_xb, ref_xb, rtol=2e-2, atol=2e-2), (
        float(jnp.max(jnp.abs(out_xb - ref_xb))))
    assert jnp.allclose(out_f, ref_f, rtol=2e-2, atol=2e-2), (
        float(jnp.max(jnp.abs(out_f - ref_f))))

    # Tuple-input path: (x - b, y + f) with the residual fused in-kernel.
    y = jax.random.normal(ykey, (B, heads * out_dim, L), jnp.float32)
    t_xb, t_yf = parallel_block_forward(params, (x, y))
    jax.block_until_ready(t_yf)
    assert jnp.allclose(t_xb, ref_xb, rtol=2e-2, atol=2e-2)
    assert jnp.allclose(t_yf, y + ref_f, rtol=2e-2, atol=2e-2)

    # Non-128-multiple length exercises the (minimal) lane-padding path.
    x2 = jax.random.normal(jax.random.PRNGKey(2), (B, heads * input_dim, 100),
                           jnp.float32)
    p_xb, p_f = parallel_block_forward(params, x2)
    jax.block_until_ready(p_f)
    r_xb, r_f = _reference_forward(params, x2)
    assert jnp.allclose(p_xb, r_xb, rtol=2e-2, atol=2e-2)
    assert jnp.allclose(p_f, r_f, rtol=2e-2, atol=2e-2)

    print("KERNEL_OK")
</pallas_src>

<mosaic_0001>
module attributes {stable_mosaic.version = 11 : i64} {
  func.func @_parallel_block_kernel(%arg0: i32, %arg1: i32, %arg2: memref<1x16x256xf32, #tpu.memory_space<vmem>>, %arg3: memref<32x16xbf16, #tpu.memory_space<vmem>>, %arg4: memref<3x32x32xbf16, #tpu.memory_space<vmem>>, %arg5: memref<16x32xbf16, #tpu.memory_space<vmem>>, %arg6: memref<16x32xbf16, #tpu.memory_space<vmem>>, %arg7: memref<32x1xf32, #tpu.memory_space<vmem>>, %arg8: memref<3x32x1xf32, #tpu.memory_space<vmem>>, %arg9: memref<16x1xf32, #tpu.memory_space<vmem>>, %arg10: memref<16x1xf32, #tpu.memory_space<vmem>>, %arg11: memref<1x16x256xf32, #tpu.memory_space<vmem>>, %arg12: memref<1x16x256xf32, #tpu.memory_space<vmem>>) attributes {dimension_semantics = [#tpu.dimension_semantics<parallel>, #tpu.dimension_semantics<parallel>], iteration_bounds = array<i64: 2, 1>, scalar_prefetch = 0 : i64, scratch_operands = 0 : i64, tpu.core_type = #tpu.core_type<tc>, window_params = [{transform_indices = @transform_0, window_bounds = array<i64: 1, 16, 256>}, {pipeline_mode = #tpu.pipeline_mode<synchronous>, transform_indices = @transform_1, window_bounds = array<i64: 32, 16>}, {pipeline_mode = #tpu.pipeline_mode<synchronous>, transform_indices = @transform_2, window_bounds = array<i64: 3, 32, 32>}, {pipeline_mode = #tpu.pipeline_mode<synchronous>, transform_indices = @transform_3, window_bounds = array<i64: 16, 32>}, {pipeline_mode = #tpu.pipeline_mode<synchronous>, transform_indices = @transform_4, window_bounds = array<i64: 16, 32>}, {pipeline_mode = #tpu.pipeline_mode<synchronous>, transform_indices = @transform_5, window_bounds = array<i64: 32, 1>}, {pipeline_mode = #tpu.pipeline_mode<synchronous>, transform_indices = @transform_6, window_bounds = array<i64: 3, 32, 1>}, {pipeline_mode = #tpu.pipeline_mode<synchronous>, transform_indices = @transform_7, window_bounds = array<i64: 16, 1>}, {pipeline_mode = #tpu.pipeline_mode<synchronous>, transform_indices = @transform_8, window_bounds = array<i64: 16, 1>}, {transform_indices = @transform_9, window_bounds = array<i64: 1, 16, 256>}, {transform_indices = @transform_10, window_bounds = array<i64: 1, 16, 256>}]} {
    %c0 = arith.constant 0 : index
    %c0_0 = arith.constant 0 : index
    %c0_1 = arith.constant 0 : index
    %0 = vector.load %arg2[%c0, %c0_0, %c0_1] : memref<1x16x256xf32, #tpu.memory_space<vmem>>, vector<1x16x256xf32>
    %1 = vector.shape_cast %0 : vector<1x16x256xf32> to vector<16x256xf32>
    %c0_2 = arith.constant 0 : index
    %c0_3 = arith.constant 0 : index
    %2 = vector.load %arg3[%c0_2, %c0_3] : memref<32x16xbf16, #tpu.memory_space<vmem>>, vector<32x16xbf16>
    %3 = arith.truncf %1 : vector<16x256xf32> to vector<16x256xbf16>
    %cst = arith.constant dense<0.000000e+00> : vector<32x256xf32>
    %4 = tpu.matmul %2, %3, %cst {dimension_numbers = #tpu.dot_dimension_numbers<[1], [0], [0], [1], [0, 0, 1, 1], [], []>} : vector<32x16xbf16>, vector<16x256xbf16>, vector<32x256xf32> -> vector<32x256xf32>
    %c0_4 = arith.constant 0 : index
    %c0_5 = arith.constant 0 : index
    %5 = vector.load %arg7[%c0_4, %c0_5] : memref<32x1xf32, #tpu.memory_space<vmem>>, vector<32x1xf32>
    %6 = vector.broadcast %5 : vector<32x1xf32> to vector<32x256xf32>
    %7 = arith.addf %4, %6 : vector<32x256xf32>
    %cst_6 = arith.constant 0.000000e+00 : f32
    %8 = vector.broadcast %cst_6 : f32 to vector<32x256xf32>
    %9 = arith.maximumf %7, %8 : vector<32x256xf32>
    %c0_7 = arith.constant 0 : index
    %c0_8 = arith.constant 0 : index
    %c0_9 = arith.constant 0 : index
    %10 = vector.load %arg4[%c0_7, %c0_8, %c0_9] : memref<3x32x32xbf16, #tpu.memory_space<vmem>>, vector<1x32x32xbf16>
    %11 = vector.shape_cast %10 : vector<1x32x32xbf16> to vector<32x32xbf16>
    %12 = arith.truncf %9 : vector<32x256xf32> to vector<32x256xbf16>
    %cst_10 = arith.constant dense<0.000000e+00> : vector<32x256xf32>
    %13 = tpu.matmul %11, %12, %cst_10 {dimension_numbers = #tpu.dot_dimension_numbers<[1], [0], [0], [1], [0, 0, 1, 1], [], []>} : vector<32x32xbf16>, vector<32x256xbf16>, vector<32x256xf32> -> vector<32x256xf32>
    %c0_11 = arith.constant 0 : index
    %c0_12 = arith.constant 0 : index
    %c0_13 = arith.constant 0 : index
    %14 = vector.load %arg8[%c0_11, %c0_12, %c0_13] : memref<3x32x1xf32, #tpu.memory_space<vmem>>, vector<1x32x1xf32>
    %15 = vector.shape_cast %14 : vector<1x32x1xf32> to vector<32x1xf32>
    %16 = vector.broadcast %15 : vector<32x1xf32> to vector<32x256xf32>
    %17 = arith.addf %13, %16 : vector<32x256xf32>
    %cst_14 = arith.constant 0.000000e+00 : f32
    %18 = vector.broadcast %cst_14 : f32 to vector<32x256xf32>
    %19 = arith.maximumf %17, %18 : vector<32x256xf32>
    %c1 = arith.constant 1 : index
    %c0_15 = arith.constant 0 : index
    %c0_16 = arith.constant 0 : index
    %20 = vector.load %arg4[%c1, %c0_15, %c0_16] : memref<3x32x32xbf16, #tpu.memory_space<vmem>>, vector<1x32x32xbf16>
    %21 = vector.shape_cast %20 : vector<1x32x32xbf16> to vector<32x32xbf16>
    %22 = arith.truncf %19 : vector<32x256xf32> to vector<32x256xbf16>
    %cst_17 = arith.constant dense<0.000000e+00> : vector<32x256xf32>
    %23 = tpu.matmul %21, %22, %cst_17 {dimension_numbers = #tpu.dot_dimension_numbers<[1], [0], [0], [1], [0, 0, 1, 1], [], []>} : vector<32x32xbf16>, vector<32x256xbf16>, vector<32x256xf32> -> vector<32x256xf32>
    %c1_18 = arith.constant 1 : index
    %c0_19 = arith.constant 0 : index
    %c0_20 = arith.constant 0 : index
    %24 = vector.load %arg8[%c1_18, %c0_19, %c0_20] : memref<3x32x1xf32, #tpu.memory_space<vmem>>, vector<1x32x1xf32>
    %25 = vector.shape_cast %24 : vector<1x32x1xf32> to vector<32x1xf32>
    %26 = vector.broadcast %25 : vector<32x1xf32> to vector<32x256xf32>
    %27 = arith.addf %23, %26 : vector<32x256xf32>
    %cst_21 = arith.constant 0.000000e+00 : f32
    %28 = vector.broadcast %cst_21 : f32 to vector<32x256xf32>
    %29 = arith.maximumf %27, %28 : vector<32x256xf32>
    %c2 = arith.constant 2 : index
    %c0_22 = arith.constant 0 : index
    %c0_23 = arith.constant 0 : index
    %30 = vector.load %arg4[%c2, %c0_22, %c0_23] : memref<3x32x32xbf16, #tpu.memory_space<vmem>>, vector<1x32x32xbf16>
    %31 = vector.shape_cast %30 : vector<1x32x32xbf16> to vector<32x32xbf16>
    %32 = arith.truncf %29 : vector<32x256xf32> to vector<32x256xbf16>
    %cst_24 = arith.constant dense<0.000000e+00> : vector<32x256xf32>
    %33 = tpu.matmul %31, %32, %cst_24 {dimension_numbers = #tpu.dot_dimension_numbers<[1], [0], [0], [1], [0, 0, 1, 1], [], []>} : vector<32x32xbf16>, vector<32x256xbf16>, vector<32x256xf32> -> vector<32x256xf32>
    %c2_25 = arith.constant 2 : index
    %c0_26 = arith.constant 0 : index
    %c0_27 = arith.constant 0 : index
    %34 = vector.load %arg8[%c2_25, %c0_26, %c0_27] : memref<3x32x1xf32, #tpu.memory_space<vmem>>, vector<1x32x1xf32>
    %35 = vector.shape_cast %34 : vector<1x32x1xf32> to vector<32x1xf32>
    %36 = vector.broadcast %35 : vector<32x1xf32> to vector<32x256xf32>
    %37 = arith.addf %33, %36 : vector<32x256xf32>
    %cst_28 = arith.constant 0.000000e+00 : f32
    %38 = vector.broadcast %cst_28 : f32 to vector<32x256xf32>
    %39 = arith.maximumf %37, %38 : vector<32x256xf32>
    %40 = arith.truncf %39 : vector<32x256xf32> to vector<32x256xbf16>
    %c0_29 = arith.constant 0 : index
    %c0_30 = arith.constant 0 : index
    %41 = vector.load %arg5[%c0_29, %c0_30] : memref<16x32xbf16, #tpu.memory_space<vmem>>, vector<16x32xbf16>
    %cst_31 = arith.constant dense<0.000000e+00> : vector<16x256xf32>
    %42 = tpu.matmul %41, %40, %cst_31 {dimension_numbers = #tpu.dot_dimension_numbers<[1], [0], [0], [1], [0, 0, 1, 1], [], []>} : vector<16x32xbf16>, vector<32x256xbf16>, vector<16x256xf32> -> vector<16x256xf32>
    %c0_32 = arith.constant 0 : index
    %c0_33 = arith.constant 0 : index
    %43 = vector.load %arg9[%c0_32, %c0_33] : memref<16x1xf32, #tpu.memory_space<vmem>>, vector<16x1xf32>
    %44 = vector.broadcast %43 : vector<16x1xf32> to vector<16x256xf32>
    %45 = arith.addf %42, %44 : vector<16x256xf32>
    %c0_34 = arith.constant 0 : index
    %c0_35 = arith.constant 0 : index
    %46 = vector.load %arg6[%c0_34, %c0_35] : memref<16x32xbf16, #tpu.memory_space<vmem>>, vector<16x32xbf16>
    %cst_36 = arith.constant dense<0.000000e+00> : vector<16x256xf32>
    %47 = tpu.matmul %46, %40, %cst_36 {dimension_numbers = #tpu.dot_dimension_numbers<[1], [0], [0], [1], [0, 0, 1, 1], [], []>} : vector<16x32xbf16>, vector<32x256xbf16>, vector<16x256xf32> -> vector<16x256xf32>
    %c0_37 = arith.constant 0 : index
    %c0_38 = arith.constant 0 : index
    %48 = vector.load %arg10[%c0_37, %c0_38] : memref<16x1xf32, #tpu.memory_space<vmem>>, vector<16x1xf32>
    %49 = vector.broadcast %48 : vector<16x1xf32> to vector<16x256xf32>
    %50 = arith.addf %47, %49 : vector<16x256xf32>
    %51 = arith.subf %1, %45 : vector<16x256xf32>
    %c0_39 = arith.constant 0 : index
    %c0_40 = arith.constant 0 : index
    %c0_41 = arith.constant 0 : index
    %52 = vector.load %arg11[%c0_39, %c0_40, %c0_41] : memref<1x16x256xf32, #tpu.memory_space<vmem>>, vector<1x16x256xf32>
    %53 = vector.shape_cast %52 : vector<1x16x256xf32> to vector<16x256xf32>
    %54 = vector.shape_cast %51 : vector<16x256xf32> to vector<1x16x256xf32>
    tpu.vector_store %arg11[%c0_39, %c0_40, %c0_41], %54 {strides = array<i32>} : memref<1x16x256xf32, #tpu.memory_space<vmem>>, vector<1x16x256xf32>,
    %c0_42 = arith.constant 0 : index
    %c0_43 = arith.constant 0 : index
    %c0_44 = arith.constant 0 : index
    %55 = vector.load %arg12[%c0_42, %c0_43, %c0_44] : memref<1x16x256xf32, #tpu.memory_space<vmem>>, vector<1x16x256xf32>
    %56 = vector.shape_cast %55 : vector<1x16x256xf32> to vector<16x256xf32>
    %57 = vector.shape_cast %50 : vector<16x256xf32> to vector<1x16x256xf32>
    tpu.vector_store %arg12[%c0_42, %c0_43, %c0_44], %57 {strides = array<i32>} : memref<1x16x256xf32, #tpu.memory_space<vmem>>, vector<1x16x256xf32>,
    return
  }
  func.func @transform_0(%arg0: i32, %arg1: i32) -> (i32, i32, i32) {
    %c0_i32 = arith.constant 0 : i32
    %c0_i32_0 = arith.constant 0 : i32
    return %arg0, %c0_i32, %arg1 : i32, i32, i32
  }
  func.func @transform_1(%arg0: i32, %arg1: i32) -> (i32, i32) {
    %c0_i32 = arith.constant 0 : i32
    %c0_i32_0 = arith.constant 0 : i32
    %c0_i32_1 = arith.constant 0 : i32
    return %c0_i32, %c0_i32_0 : i32, i32
  }
  func.func @transform_2(%arg0: i32, %arg1: i32) -> (i32, i32, i32) {
    %c0_i32 = arith.constant 0 : i32
    %c0_i32_0 = arith.constant 0 : i32
    %c0_i32_1 = arith.constant 0 : i32
    %c0_i32_2 = arith.constant 0 : i32
    return %c0_i32, %c0_i32_0, %c0_i32_1 : i32, i32, i32
  }
  func.func @transform_3(%arg0: i32, %arg1: i32) -> (i32, i32) {
    %c0_i32 = arith.constant 0 : i32
    %c0_i32_0 = arith.constant 0 : i32
    %c0_i32_1 = arith.constant 0 : i32
    return %c0_i32, %c0_i32_0 : i32, i32
  }
  func.func @transform_4(%arg0: i32, %arg1: i32) -> (i32, i32) {
    %c0_i32 = arith.constant 0 : i32
    %c0_i32_0 = arith.constant 0 : i32
    %c0_i32_1 = arith.constant 0 : i32
    return %c0_i32, %c0_i32_0 : i32, i32
  }
  func.func @transform_5(%arg0: i32, %arg1: i32) -> (i32, i32) {
    %c0_i32 = arith.constant 0 : i32
    %c0_i32_0 = arith.constant 0 : i32
    %c0_i32_1 = arith.constant 0 : i32
    return %c0_i32, %c0_i32_0 : i32, i32
  }
  func.func @transform_6(%arg0: i32, %arg1: i32) -> (i32, i32, i32) {
    %c0_i32 = arith.constant 0 : i32
    %c0_i32_0 = arith.constant 0 : i32
    %c0_i32_1 = arith.constant 0 : i32
    %c0_i32_2 = arith.constant 0 : i32
    return %c0_i32, %c0_i32_0, %c0_i32_1 : i32, i32, i32
  }
  func.func @transform_7(%arg0: i32, %arg1: i32) -> (i32, i32) {
    %c0_i32 = arith.constant 0 : i32
    %c0_i32_0 = arith.constant 0 : i32
    %c0_i32_1 = arith.constant 0 : i32
    return %c0_i32, %c0_i32_0 : i32, i32
  }
  func.func @transform_8(%arg0: i32, %arg1: i32) -> (i32, i32) {
    %c0_i32 = arith.constant 0 : i32
    %c0_i32_0 = arith.constant 0 : i32
    %c0_i32_1 = arith.constant 0 : i32
    return %c0_i32, %c0_i32_0 : i32, i32
  }
  func.func @transform_9(%arg0: i32, %arg1: i32) -> (i32, i32, i32) {
    %c0_i32 = arith.constant 0 : i32
    %c0_i32_0 = arith.constant 0 : i32
    return %arg0, %c0_i32, %arg1 : i32, i32, i32
  }
  func.func @transform_10(%arg0: i32, %arg1: i32) -> (i32, i32, i32) {
    %c0_i32 = arith.constant 0 : i32
    %c0_i32_0 = arith.constant 0 : i32
    return %arg0, %c0_i32, %arg1 : i32, i32, i32
  }
}

</mosaic_0001>

<llo_original>
// kernel: tpu_custom_call.1
$region0: #{tpu_custom_call.1}
  #allocation0 [shape = 'u32[]', space=smem, size = 0x4, offset = 0x4, fixed_abs, tag = 'smem constant byte address 0x4 - core index']
  #allocation1 [shape = 'u32[144,128]{1,0:T(1,128)}', space=vmem, size = 0x12000, scoped, tag = 'internal scratch']
  %s0 = inlined_call_operand.vmem [shape: f32[2,16,256], index: 0, kind: input, shape index: {}]
  %s1 = inlined_call_operand.vmem [shape: bf16[32,16], index: 1, kind: input, shape index: {}]
  %s2 = inlined_call_operand.vmem [shape: bf16[3,32,32], index: 2, kind: input, shape index: {}]
  %s3 = inlined_call_operand.vmem [shape: bf16[16,32], index: 3, kind: input, shape index: {}]
  %s4 = inlined_call_operand.vmem [shape: bf16[16,32], index: 4, kind: input, shape index: {}]
  %s5 = inlined_call_operand.vmem [shape: f32[32,1], index: 5, kind: input, shape index: {}]
  %s6 = inlined_call_operand.vmem [shape: f32[3,32,1], index: 6, kind: input, shape index: {}]
  %s7 = inlined_call_operand.vmem [shape: f32[16,1], index: 7, kind: input, shape index: {}]
  %s8 = inlined_call_operand.vmem [shape: f32[16,1], index: 8, kind: input, shape index: {}]
  %s9 = inlined_call_operand.hbm [shape: f32[2,16,256], index: 9, kind: output, shape index: {0}]
  %s10 = inlined_call_operand.hbm [shape: f32[2,16,256], index: 10, kind: output, shape index: {1}]
  %11 = xla_tuple %s9, %s10
  %s12 = sld [smem:[#allocation0]]
  $region77: #{tpu_custom_call.1} parent=0
    _
  %s14 = ssub.s32 1, %s12
  %s15 = scalar_select 0, %s14, %s12
  $region1: #{tpu_custom_call.1} parent=0
    #allocation2 [shape = 'u8[32768]{0}', space=vmem, size = 0x8000, scoped, tag = 'output window, operand 0']
    #allocation3 [shape = 's32[2]{0}', space=sflag, size = 0x8, scoped, tag = 'scoped memory for tpu_custom_call.1']
    #allocation4 [shape = 'u8[32768]{0}', space=vmem, size = 0x8000, scoped, tag = 'output window, operand 1']
    #allocation5 [shape = 's32[2]{0}', space=sflag, size = 0x8, scoped, tag = 'scoped memory for tpu_custom_call.1']
    %16 = vsyncpa [#allocation3], 0
    %s17 = scalar_lea.sflag [#allocation3], 1
    %18 = vsyncpa %s17, 0
    %19 = vsyncpa [#allocation5], 0
    %s20 = scalar_lea.sflag [#allocation5], 1
    %21 = vsyncpa %s20, 0
    loop: start=0, step=1, limit=4
    $region2: #{tpu_custom_call.1} parent=1 // loop_pre_header
      _
    $region3: #{tpu_custom_call.1} parent=1 // loop_header
      %s23 = sphi 0, %s27
      %p24 = scmp.ge.s32.totalorder %s23, 4
      %s30 = sphi 0, %s42
      %s31 = sphi 0, %s38
      %s32 = sphi 0, %s30
      %s33 = sphi 0, %s31
      %s34 = sphi 0, %s32
      %s35 = sphi 0, %s33
      %s47 = sphi 0, %s49
      %s50 = sphi 0, %s47
      %s51 = sphi 0, %s50
      %s67 = sphi 0, %s51
      %s71 = sphi 0, %s71
      %s73 = sphi 0, %s71
      %s74 = sphi 0, %s73
      %s88 = sphi 0, %s74
      %s92 = sphi 0, %s92
      %s94 = sphi 0, %s92
      %s95 = sphi 0, %s94
      %s109 = sphi 0, %s95
      %s113 = sphi 0, %s113
      %s115 = sphi 0, %s113
      %s116 = sphi 0, %s115
      %s130 = sphi 0, %s116
      %s134 = sphi 0, %s134
      %s136 = sphi 0, %s134
      %s137 = sphi 0, %s136
      %s151 = sphi 0, %s137
      %s155 = sphi 0, %s155
      %s157 = sphi 0, %s155
      %s158 = sphi 0, %s157
      %s172 = sphi 0, %s158
      %s176 = sphi 0, %s176
      %s178 = sphi 0, %s176
      %s179 = sphi 0, %s178
      %s193 = sphi 0, %s179
      %s197 = sphi 0, %s197
      %s199 = sphi 0, %s197
      %s200 = sphi 0, %s199
      %s214 = sphi 0, %s200
      %s218 = sphi 0, %s218
      %s220 = sphi 0, %s218
      %s221 = sphi 0, %s220
      %s235 = sphi 0, %s221
      %s243 = sphi 0, %s245
      %s246 = sphi 0, %s243
      %s247 = sphi 0, %s246
      %s263 = sphi 0, %s247
      %s271 = sphi 0, %s273
      %s274 = sphi 0, %s271
      %s275 = sphi 0, %s274
      %s291 = sphi 0, %s275
    $region4: #{tpu_custom_call.1} parent=1 // loop_header_branch
      %26 = sbr.rel (%p24) target = $region8
    $region5: #{tpu_custom_call.1} parent=1 // loop_body
      %s28 = ssub.s32 %s23, 1
      %s29 = ssub.s32 %s23, 2
      %s36 = sadd.s32 1, %s31
      %p37 = scmp.ge.s32.totalorder %s36, 1
      %s38 = scalar_select %p37, 0, %s36
      %s39 = sadd.s32 1, %s30
      %s40 = scalar_select %p37, %s39, %s30
      %p41 = scmp.ge.s32.totalorder %s40, 2
      %s42 = scalar_select %p41, 0, %s40
      %s43 = ssub.s32 %s30, %s42
      %s44 = ssub.s32 %s31, %s38
      %s45 = sor.u32 %s43, %s44
      %p46 = scmp.eq.s32.totalorder %s45, 0
      %s48 = sadd.s32 %s47, 1
      %s49 = scalar_select %p46, %s47, %s48
      %p52 = pneg %p46
      %p53 = scmp.eq.s32.totalorder %s23, 1
      %p54 = por %p52, %p53
      %p55 = scmp.ne.s32.totalorder %s47, %s50
      %p56 = scmp.eq.s32.totalorder %s23, 0
      %p57 = por %p55, %p56
      %p58 = scmp.ne.s32.totalorder %s47, %s50
      %p59 = scmp.eq.s32.totalorder %s28, 1
      %p60 = por %p58, %p59
      %p61 = scmp.ne.s32.totalorder %s50, %s51
      %p62 = scmp.eq.s32.totalorder %s28, 0
      %p63 = por %p61, %p62
      %p64 = scmp.ne.s32.totalorder %s50, %s51
      %p65 = scmp.eq.s32.totalorder %s29, 1
      %p66 = por %p64, %p65
      %p68 = scmp.ne.s32.totalorder %s51, %s67
      %p69 = scmp.eq.s32.totalorder %s29, 0
      %p70 = por %p68, %p69
      %s72 = sadd.s32 %s71, 1
      %p75 = scmp.eq.s32.totalorder %s23, 1
      %p76 = scmp.ne.s32.totalorder %s71, %s73
      %p77 = scmp.eq.s32.totalorder %s23, 0
      %p78 = por %p76, %p77
      %p79 = scmp.ne.s32.totalorder %s71, %s73
      %p80 = scmp.eq.s32.totalorder %s28, 1
      %p81 = por %p79, %p80
      %p82 = scmp.ne.s32.totalorder %s73, %s74
      %p83 = scmp.eq.s32.totalorder %s28, 0
      %p84 = por %p82, %p83
      %p85 = scmp.ne.s32.totalorder %s73, %s74
      %p86 = scmp.eq.s32.totalorder %s29, 1
      %p87 = por %p85, %p86
      %p89 = scmp.ne.s32.totalorder %s74, %s88
      %p90 = scmp.eq.s32.totalorder %s29, 0
      %p91 = por %p89, %p90
      %s93 = sadd.s32 %s92, 1
      %p96 = scmp.eq.s32.totalorder %s23, 1
      %p97 = scmp.ne.s32.totalorder %s92, %s94
      %p98 = scmp.eq.s32.totalorder %s23, 0
      %p99 = por %p97, %p98
      %p100 = scmp.ne.s32.totalorder %s92, %s94
      %p101 = scmp.eq.s32.totalorder %s28, 1
      %p102 = por %p100, %p101
      %p103 = scmp.ne.s32.totalorder %s94, %s95
      %p104 = scmp.eq.s32.totalorder %s28, 0
      %p105 = por %p103, %p104
      %p106 = scmp.ne.s32.totalorder %s94, %s95
      %p107 = scmp.eq.s32.totalorder %s29, 1
      %p108 = por %p106, %p107
      %p110 = scmp.ne.s32.totalorder %s95, %s109
      %p111 = scmp.eq.s32.totalorder %s29, 0
      %p112 = por %p110, %p111
      %s114 = sadd.s32 %s113, 1
      %p117 = scmp.eq.s32.totalorder %s23, 1
      %p118 = scmp.ne.s32.totalorder %s113, %s115
      %p119 = scmp.eq.s32.totalorder %s23, 0
      %p120 = por %p118, %p119
      %p121 = scmp.ne.s32.totalorder %s113, %s115
      %p122 = scmp.eq.s32.totalorder %s28, 1
      %p123 = por %p121, %p122
      %p124 = scmp.ne.s32.totalorder %s115, %s116
      %p125 = scmp.eq.s32.totalorder %s28, 0
      %p126 = por %p124, %p125
      %p127 = scmp.ne.s32.totalorder %s115, %s116
      %p128 = scmp.eq.s32.totalorder %s29, 1
      %p129 = por %p127, %p128
      %p131 = scmp.ne.s32.totalorder %s116, %s130
      %p132 = scmp.eq.s32.totalorder %s29, 0
      %p133 = por %p131, %p132
      %s135 = sadd.s32 %s134, 1
      %p138 = scmp.eq.s32.totalorder %s23, 1
      %p139 = scmp.ne.s32.totalorder %s134, %s136
      %p140 = scmp.eq.s32.totalorder %s23, 0
      %p141 = por %p139, %p140
      %p142 = scmp.ne.s32.totalorder %s134, %s136
      %p143 = scmp.eq.s32.totalorder %s28, 1
      %p144 = por %p142, %p143
      %p145 = scmp.ne.s32.totalorder %s136, %s137
      %p146 = scmp.eq.s32.totalorder %s28, 0
      %p147 = por %p145, %p146
      %p148 = scmp.ne.s32.totalorder %s136, %s137
      %p149 = scmp.eq.s32.totalorder %s29, 1
      %p150 = por %p148, %p149
      %p152 = scmp.ne.s32.totalorder %s137, %s151
      %p153 = scmp.eq.s32.totalorder %s29, 0
      %p154 = por %p152, %p153
      %s156 = sadd.s32 %s155, 1
      %p159 = scmp.eq.s32.totalorder %s23, 1
      %p160 = scmp.ne.s32.totalorder %s155, %s157
      %p161 = scmp.eq.s32.totalorder %s23, 0
      %p162 = por %p160, %p161
      %p163 = scmp.ne.s32.totalorder %s155, %s157
      %p164 = scmp.eq.s32.totalorder %s28, 1
      %p165 = por %p163, %p164
      %p166 = scmp.ne.s32.totalorder %s157, %s158
      %p167 = scmp.eq.s32.totalorder %s28, 0
      %p168 = por %p166, %p167
      %p169 = scmp.ne.s32.totalorder %s157, %s158
      %p170 = scmp.eq.s32.totalorder %s29, 1
      %p171 = por %p169, %p170
      %p173 = scmp.ne.s32.totalorder %s158, %s172
      %p174 = scmp.eq.s32.totalorder %s29, 0
      %p175 = por %p173, %p174
      %s177 = sadd.s32 %s176, 1
      %p180 = scmp.eq.s32.totalorder %s23, 1
      %p181 = scmp.ne.s32.totalorder %s176, %s178
      %p182 = scmp.eq.s32.totalorder %s23, 0
      %p183 = por %p181, %p182
      %p184 = scmp.ne.s32.totalorder %s176, %s178
      %p185 = scmp.eq.s32.totalorder %s28, 1
      %p186 = por %p184, %p185
      %p187 = scmp.ne.s32.totalorder %s178, %s179
      %p188 = scmp.eq.s32.totalorder %s28, 0
      %p189 = por %p187, %p188
      %p190 = scmp.ne.s32.totalorder %s178, %s179
      %p191 = scmp.eq.s32.totalorder %s29, 1
      %p192 = por %p190, %p191
      %p194 = scmp.ne.s32.totalorder %s179, %s193
      %p195 = scmp.eq.s32.totalorder %s29, 0
      %p196 = por %p194, %p195
      %s198 = sadd.s32 %s197, 1
      %p201 = scmp.eq.s32.totalorder %s23, 1
      %p202 = scmp.ne.s32.totalorder %s197, %s199
      %p203 = scmp.eq.s32.totalorder %s23, 0
      %p204 = por %p202, %p203
      %p205 = scmp.ne.s32.totalorder %s197, %s199
      %p206 = scmp.eq.s32.totalorder %s28, 1
      %p207 = por %p205, %p206
      %p208 = scmp.ne.s32.totalorder %s199, %s200
      %p209 = scmp.eq.s32.totalorder %s28, 0
      %p210 = por %p208, %p209
      %p211 = scmp.ne.s32.totalorder %s199, %s200
      %p212 = scmp.eq.s32.totalorder %s29, 1
      %p213 = por %p211, %p212
      %p215 = scmp.ne.s32.totalorder %s200, %s214
      %p216 = scmp.eq.s32.totalorder %s29, 0
      %p217 = por %p215, %p216
      %s219 = sadd.s32 %s218, 1
      %p222 = scmp.eq.s32.totalorder %s23, 1
      %p223 = scmp.ne.s32.totalorder %s218, %s220
      %p224 = scmp.eq.s32.totalorder %s23, 0
      %p225 = por %p223, %p224
      %p226 = scmp.ne.s32.totalorder %s218, %s220
      %p227 = scmp.eq.s32.totalorder %s28, 1
      %p228 = por %p226, %p227
      %p229 = scmp.ne.s32.totalorder %s220, %s221
      %p230 = scmp.eq.s32.totalorder %s28, 0
      %p231 = por %p229, %p230
      %p232 = scmp.ne.s32.totalorder %s220, %s221
      %p233 = scmp.eq.s32.totalorder %s29, 1
      %p234 = por %p232, %p233
      %p236 = scmp.ne.s32.totalorder %s221, %s235
      %p237 = scmp.eq.s32.totalorder %s29, 0
      %p238 = por %p236, %p237
      %s239 = ssub.s32 %s30, %s42
      %s240 = ssub.s32 %s31, %s38
      %s241 = sor.u32 %s239, %s240
      %p242 = scmp.eq.s32.totalorder %s241, 0
      %s244 = sadd.s32 %s243, 1
      %s245 = scalar_select %p242, %s243, %s244
      %p248 = pneg %p242
      %p249 = scmp.eq.s32.totalorder %s23, 1
      %p250 = por %p248, %p249
      %p251 = scmp.ne.s32.totalorder %s243, %s246
      %p252 = scmp.eq.s32.totalorder %s23, 0
      %p253 = por %p251, %p252
      %p254 = scmp.ne.s32.totalorder %s243, %s246
      %p255 = scmp.eq.s32.totalorder %s28, 1
      %p256 = por %p254, %p255
      %p257 = scmp.ne.s32.totalorder %s246, %s247
      %p258 = scmp.eq.s32.totalorder %s28, 0
      %p259 = por %p257, %p258
      %p260 = scmp.ne.s32.totalorder %s246, %s247
      %p261 = scmp.eq.s32.totalorder %s29, 1
      %p262 = por %p260, %p261
      %p264 = scmp.ne.s32.totalorder %s247, %s263
      %p265 = scmp.eq.s32.totalorder %s29, 0
      %p266 = por %p264, %p265
      %s267 = ssub.s32 %s30, %s42
      %s268 = ssub.s32 %s31, %s38
      %s269 = sor.u32 %s267, %s268
      %p270 = scmp.eq.s32.totalorder %s269, 0
      %s272 = sadd.s32 %s271, 1
      %s273 = scalar_select %p270, %s271, %s272
      %p276 = pneg %p270
      %p277 = scmp.eq.s32.totalorder %s23, 1
      %p278 = por %p276, %p277
      %p279 = scmp.ne.s32.totalorder %s271, %s274
      %p280 = scmp.eq.s32.totalorder %s23, 0
      %p281 = por %p279, %p280
      %p282 = scmp.ne.s32.totalorder %s271, %s274
      %p283 = scmp.eq.s32.totalorder %s28, 1
      %p284 = por %p282, %p283
      %p285 = scmp.ne.s32.totalorder %s274, %s275
      %p286 = scmp.eq.s32.totalorder %s28, 0
      %p287 = por %p285, %p286
      %p288 = scmp.ne.s32.totalorder %s274, %s275
      %p289 = scmp.eq.s32.totalorder %s29, 1
      %p290 = por %p288, %p289
      %p292 = scmp.ne.s32.totalorder %s275, %s291
      %p293 = scmp.eq.s32.totalorder %s29, 0
      %p294 = por %p292, %p293
      %p295 = scmp.le.s32.totalorder 1, %s23
      %p296 = scmp.lt.s32.totalorder %s23, 3
      %p297 = pnand %p295, %p296
      %p298 = pneg %p297
      // Predicated region
      $region9: #{tpu_custom_call.1} parent=5 // pred_check
        _
      $region10: #{tpu_custom_call.1} parent=5 // pred_check_branch
        %300 = sbr.rel (%p297) target = $region12
      $region11: #{tpu_custom_call.1} parent=5 // pred_region
        %s301 = ssub.s32 %s23, 1
        // Predicated region
        $region13: #{tpu_custom_call.1} parent=11 // pred_check
          %p302 = pneg %p84
        $region14: #{tpu_custom_call.1} parent=11 // pred_check_branch
          %304 = sbr.rel (%p302) target = $region16
        $region15: #{tpu_custom_call.1} parent=11 // pred_region
          _
        $region16: #{tpu_custom_call.1} parent=11 // pred_fallthru
          _
        // Predicated region
        $region17: #{tpu_custom_call.1} parent=11 // pred_check
          %p305 = pneg %p105
        $region18: #{tpu_custom_call.1} parent=11 // pred_check_branch
          %307 = sbr.rel (%p305) target = $region20
        $region19: #{tpu_custom_call.1} parent=11 // pred_region
          _
        $region20: #{tpu_custom_call.1} parent=11 // pred_fallthru
          _
        // Predicated region
        $region21: #{tpu_custom_call.1} parent=11 // pred_check
          %p308 = pneg %p126
        $region22: #{tpu_custom_call.1} parent=11 // pred_check_branch
          %310 = sbr.rel (%p308) target = $region24
        $region23: #{tpu_custom_call.1} parent=11 // pred_region
          _
        $region24: #{tpu_custom_call.1} parent=11 // pred_fallthru
          _
        // Predicated region
        $region25: #{tpu_custom_call.1} parent=11 // pred_check
          %p311 = pneg %p147
        $region26: #{tpu_custom_call.1} parent=11 // pred_check_branch
          %313 = sbr.rel (%p311) target = $region28
        $region27: #{tpu_custom_call.1} parent=11 // pred_region
          _
        $region28: #{tpu_custom_call.1} parent=11 // pred_fallthru
          _
        // Predicated region
        $region29: #{tpu_custom_call.1} parent=11 // pred_check
          %p314 = pneg %p168
        $region30: #{tpu_custom_call.1} parent=11 // pred_check_branch
          %316 = sbr.rel (%p314) target = $region32
        $region31: #{tpu_custom_call.1} parent=11 // pred_region
          _
        $region32: #{tpu_custom_call.1} parent=11 // pred_fallthru
          _
        // Predicated region
        $region33: #{tpu_custom_call.1} parent=11 // pred_check
          %p317 = pneg %p189
        $region34: #{tpu_custom_call.1} parent=11 // pred_check_branch
          %319 = sbr.rel (%p317) target = $region36
        $region35: #{tpu_custom_call.1} parent=11 // pred_region
          _
        $region36: #{tpu_custom_call.1} parent=11 // pred_fallthru
          _
        // Predicated region
        $region37: #{tpu_custom_call.1} parent=11 // pred_check
          %p320 = pneg %p210
        $region38: #{tpu_custom_call.1} parent=11 // pred_check_branch
          %322 = sbr.rel (%p320) target = $region40
        $region39: #{tpu_custom_call.1} parent=11 // pred_region
          _
        $region40: #{tpu_custom_call.1} parent=11 // pred_fallthru
          _
        // Predicated region
        $region41: #{tpu_custom_call.1} parent=11 // pred_check
          %p323 = pneg %p231
        $region42: #{tpu_custom_call.1} parent=11 // pred_check_branch
          %325 = sbr.rel (%p323) target = $region44
        $region43: #{tpu_custom_call.1} parent=11 // pred_region
          _
        $region44: #{tpu_custom_call.1} parent=11 // pred_fallthru
          _
      $region12: #{tpu_custom_call.1} parent=5 // pred_fallthru
        _
      %p326 = scmp.lt.s32.totalorder %s23, 2
      // Predicated region
      $region45: #{tpu_custom_call.1} parent=5 // pred_check
        %p327 = pneg %p326
      $region46: #{tpu_custom_call.1} parent=5 // pred_check_branch
        %329 = sbr.rel (%p327) target = $region48
      $region47: #{tpu_custom_call.1} parent=5 // pred_region
        // Predicated region
        $region49: #{tpu_custom_call.1} parent=47 // pred_check
          %p330 = pneg %p57
        $region50: #{tpu_custom_call.1} parent=47 // pred_check_branch
          %332 = sbr.rel (%p330) target = $region52
        $region51: #{tpu_custom_call.1} parent=47 // pred_region
          %s333 = smul.u32 2, %s31
          %p334 = scmp.lt.s32.totalorder %s30, 1
          %s335 = scalar_select %p334, %s30, 1
          %p336 = scmp.lt.s32.totalorder %s333, 1
          %s337 = scalar_select %p336, %s333, 1
          %s338 = smul.addr %s335, 4
          %s339 = sadd.s32 %s337, %s338
          %s340 = smul.addr %s339, 8
          %s341 = scalar_lea.vmem %s0, %s340
          %s342 = smul.u32 2, %s31
        $region52: #{tpu_custom_call.1} parent=47 // pred_fallthru
          _
      $region48: #{tpu_custom_call.1} parent=5 // pred_fallthru
        _
      %p343 = scmp.le.s32.totalorder 1, %s23
      %p344 = scmp.lt.s32.totalorder %s23, 3
      %p345 = pnand %p343, %p344
      %p346 = pneg %p345
      // Predicated region
      $region53: #{tpu_custom_call.1} parent=5 // pred_check
        _
      $region54: #{tpu_custom_call.1} parent=5 // pred_check_branch
        %348 = sbr.rel (%p345) target = $region56
      $region55: #{tpu_custom_call.1} parent=5 // pred_region
        %s349 = ssub.s32 %s23, 1
        %s350 = smul.u32 2, %s33
        %p351 = scmp.lt.s32.totalorder %s32, 1
        %s352 = scalar_select %p351, %s32, 1
        %p353 = scmp.lt.s32.totalorder %s350, 1
        %s354 = scalar_select %p353, %s350, 1
        %s355 = smul.addr %s352, 4
        %s356 = sadd.s32 %s354, %s355
        %s357 = smul.addr %s356, 8
        %s358 = scalar_lea.vmem %s0, %s357
        %p359 = pneg %p63
        %p360 = pneg %p60
        %p361 = pneg %p84
        %p362 = pneg %p81
        %p363 = pneg %p105
        %p364 = pneg %p102
        %p365 = pneg %p126
        %p366 = pneg %p123
        %p367 = pneg %p147
        %p368 = pneg %p144
        %p369 = pneg %p168
        %p370 = pneg %p165
        %p371 = pneg %p189
        %p372 = pneg %p186
        %p373 = pneg %p210
        %p374 = pneg %p207
        %p375 = pneg %p231
        %p376 = pneg %p228
        %p377 = pneg %p259
        %p378 = pneg %p256
        %s379 = sand.u32 %s246, 1
        %s380 = scalar_lea.sflag [#allocation3], %s379
        %s381 = sand.u32 %s246, 1
        %s382 = smul.addr %s381, 32
        %s383 = scalar_lea.vmem [#allocation2], %s382
        %p384 = pneg %p287
        %p385 = pneg %p284
        %s386 = sand.u32 %s274, 1
        %s387 = scalar_lea.sflag [#allocation5], %s386
        %s388 = sand.u32 %s274, 1
        %s389 = smul.addr %s388, 32
        %s390 = scalar_lea.vmem [#allocation4], %s389
        %s391 = smul.u32 2, %s33
        %p392 = scmp.lt.s32.totalorder %s32, 1
        %s393 = scalar_select %p392, %s32, 1
        %p394 = scmp.lt.s32.totalorder %s391, 1
        %s395 = scalar_select %p394, %s391, 1
        %s396 = smul.addr %s393, 4
        %s397 = sadd.s32 %s395, %s396
        %s398 = smul.addr %s397, 8
        %s399 = scalar_lea.vmem %s0, %s398
        %s400 = smul.u32 2, %s33
        %s401 = smul.u32 2, %s33
        %s402 = smul.u32 2, %s33
        %v404 = vld [vmem:[%s399] sm:$0xff]
        %v405 = vld [vmem:[%s399 + $0x8] sm:$0xff]
        %v406 = vld [vmem:[%s399 + $0x10] sm:$0xff]
        %v407 = vld [vmem:[%s399 + $0x18] sm:$0xff]
        %v408 = vld [vmem:[%s1] sm:$0xf]
        %v409 = vld [vmem:[%s1 + $0x4] sm:$0xf]
        %v410 = vld [vmem:[%s1 + $0x8] sm:$0xf]
        %v411 = vld [vmem:[%s1 + $0xc] sm:$0xf]
        %v412 = vpack.c.bf16 %v406, %v404
        %v413 = vpack.c.bf16 %v407, %v405
        %v414 = vld [vmem:[%s5] sm:$0xff]
        %v415 = vld [vmem:[%s5 + $0x8] sm:$0xff]
        %v416 = vld [vmem:[%s5 + $0x10] sm:$0xff]
        %v417 = vld [vmem:[%s5 + $0x18] sm:$0xff]
        %419 = vset.pattern.permute.xlu0 0
        %420 = vperm.xlu0 %419, %v414
        %v421 = vpop.permute.xlu0 %420
        %424 = vset.pattern.permute.xlu0 0
        %425 = vperm.xlu0 %424, %v415
        %v426 = vpop.permute.xlu0 %425
        %429 = vset.pattern.permute.xlu0 0
        %430 = vperm.xlu0 %429, %v416
        %v431 = vpop.permute.xlu0 %430
        %434 = vset.pattern.permute.xlu0 0
        %435 = vperm.xlu0 %434, %v417
        %v436 = vpop.permute.xlu0 %435
        %v442 = vunpack.c.l.b16 %v408
        %v443 = vunpack.c.l.b16 %v409
        %v444 = vunpack.c.l.b16 %v410
        %v445 = vunpack.c.l.b16 %v411
        %v446 = vpack.c.b16 %v443, %v442
        %v447 = vpack.c.b16 %v445, %v444
        %vm448 = vcmask 130048
        %v450 = vsel %vm448, %v446, 0
        %v453 = vsel %vm448, %v447, 0
        %455 = vmatprep.subr.bf16.mxu0 %v413
        %456 = vmatpush1.bf16.msra.mxu0 %v412
        %457 = vmatprep.subr.bf16.mxu0 0
        %458 = vmatpush1.bf16.msra.mxu0 0
        %459 = vmatprep.subr.bf16.mxu0 0
        %460 = vmatpush1.bf16.msra.mxu0 0
        %461 = vmatprep.subr.bf16.mxu0 0
        %462 = vmatpush1.bf16.msra.mxu0 0
        %463 = vmatprep.subr.bf16.mxu0 0
        %464 = vmatpush1.bf16.msra.mxu0 0
        %465 = vmatprep.subr.bf16.mxu0 0
        %466 = vmatpush1.bf16.msra.mxu0 0
        %467 = vmatprep.subr.bf16.mxu0 0
        %468 = vmatpush1.bf16.msra.mxu0 0
        %469 = vmatprep.subr.bf16.mxu0 0
        %470 = vmatpush1.bf16.msra.mxu0 0
        %471 = vmatprep.subr.bf16.mxu0 0
        %472 = vmatpush1.bf16.msra.mxu0 0
        %473 = vmatprep.subr.bf16.mxu0 0
        %474 = vmatpush1.bf16.msra.mxu0 0
        %475 = vmatprep.subr.bf16.mxu0 0
        %476 = vmatpush1.bf16.msra.mxu0 0
        %477 = vmatprep.subr.bf16.mxu0 0
        %478 = vmatpush1.bf16.msra.mxu0 0
        %479 = vmatprep.subr.bf16.mxu0 0
        %480 = vmatpush1.bf16.msra.mxu0 0
        %481 = vmatprep.subr.bf16.mxu0 0
        %482 = vmatpush1.bf16.msra.mxu0 0
        %483 = vmatprep.subr.bf16.mxu0 0
        %484 = vmatpush1.bf16.msra.mxu0 0
        %485 = vmatprep.subr.bf16.mxu0 0
        %486 = vmatpush1.bf16.msra.mxu0 0
        %487 = vmatprep.mubr.bf16.mxu0 0
        %488 = vmatmul.mubr.bf16.gmra.mrb[0].mxu0 %v450
        %v489 = vpop.f32.mrb[0].mxu0
        %v490 = vadd.f32 %v421, %v489
        %v491 = vpop.f32.mrb[0].mxu0
        %v492 = vadd.f32 %v421, %v491
        %v493 = vpop.f32.mrb[0].mxu0
        %v494 = vadd.f32 %v426, %v493
        %v495 = vpop.f32.mrb[0].mxu0
        %v496 = vadd.f32 %v426, %v495
        %497 = vmatprep.mubr.bf16.mxu0 0
        %498 = vmatmul.mubr.bf16.gmra.mrb[0].mxu0 %v453
        %v499 = vpop.f32.mrb[0].mxu0
        %v500 = vadd.f32 %v431, %v499
        %v501 = vpop.f32.mrb[0].mxu0
        %v502 = vadd.f32 %v431, %v501
        %v503 = vpop.f32.mrb[0].mxu0
        %v504 = vadd.f32 %v436, %v503
        %v505 = vpop.f32.mrb[0].mxu0
        %v506 = vadd.f32 %v436, %v505
        %507 = vdwg.mxu0
        %v508 = vmax.f32 %v490, 0.0
        %v509 = vmax.f32 %v492, 0.0
        %v510 = vmax.f32 %v494, 0.0
        %v511 = vmax.f32 %v496, 0.0
        %v512 = vmax.f32 %v500, 0.0
        %v513 = vmax.f32 %v502, 0.0
        %v514 = vmax.f32 %v504, 0.0
        %v515 = vmax.f32 %v506, 0.0
        %v516 = vld [vmem:[%s2] sm:$0xf]
        %v517 = vld [vmem:[%s2 + $0x4] sm:$0xf]
        %v518 = vld [vmem:[%s2 + $0x8] sm:$0xf]
        %v519 = vld [vmem:[%s2 + $0xc] sm:$0xf]
        %v520 = vpack.c.bf16 %v510, %v508
        %v521 = vpack.c.bf16 %v511, %v509
        %v522 = vpack.c.bf16 %v514, %v512
        %v523 = vpack.c.bf16 %v515, %v513
        %v524 = vld [vmem:[%s6] sm:$0xff]
        %v525 = vld [vmem:[%s6 + $0x8] sm:$0xff]
        %v526 = vld [vmem:[%s6 + $0x10] sm:$0xff]
        %v527 = vld [vmem:[%s6 + $0x18] sm:$0xff]
        %529 = vset.pattern.permute.xlu0 0
        %530 = vperm.xlu0 %529, %v524
        %v531 = vpop.permute.xlu0 %530
        %534 = vset.pattern.permute.xlu0 0
        %535 = vperm.xlu0 %534, %v525
        %v536 = vpop.permute.xlu0 %535
        %539 = vset.pattern.permute.xlu0 0
        %540 = vperm.xlu0 %539, %v526
        %v541 = vpop.permute.xlu0 %540
        %544 = vset.pattern.permute.xlu0 0
        %545 = vperm.xlu0 %544, %v527
        %v546 = vpop.permute.xlu0 %545
        %v552 = vunpack.c.l.b16 %v516
        %v553 = vunpack.c.l.b16 %v517
        %v554 = vunpack.c.l.b16 %v518
        %v555 = vunpack.c.l.b16 %v519
        %v556 = vpack.c.b16 %v553, %v552
        %v557 = vpack.c.b16 %v555, %v554
        %vm558 = vcmask 261120
        %v560 = vsel %vm558, %v556, 0
        %v563 = vsel %vm558, %v557, 0
        %565 = vmatprep.subr.bf16.mxu0 %v521
        %566 = vmatpush1.bf16.msra.mxu0 %v520
        %567 = vmatprep.subr.bf16.mxu0 %v523
        %568 = vmatpush1.bf16.msra.mxu0 %v522
        %569 = vmatprep.subr.bf16.mxu0 0
        %570 = vmatpush1.bf16.msra.mxu0 0
        %571 = vmatprep.subr.bf16.mxu0 0
        %572 = vmatpush1.bf16.msra.mxu0 0
        %573 = vmatprep.subr.bf16.mxu0 0
        %574 = vmatpush1.bf16.msra.mxu0 0
        %575 = vmatprep.subr.bf16.mxu0 0
        %576 = vmatpush1.bf16.msra.mxu0 0
        %577 = vmatprep.subr.bf16.mxu0 0
        %578 = vmatpush1.bf16.msra.mxu0 0
        %579 = vmatprep.subr.bf16.mxu0 0
        %580 = vmatpush1.bf16.msra.mxu0 0
        %581 = vmatprep.subr.bf16.mxu0 0
        %582 = vmatpush1.bf16.msra.mxu0 0
        %583 = vmatprep.subr.bf16.mxu0 0
        %584 = vmatpush1.bf16.msra.mxu0 0
        %585 = vmatprep.subr.bf16.mxu0 0
        %586 = vmatpush1.bf16.msra.mxu0 0
        %587 = vmatprep.subr.bf16.mxu0 0
        %588 = vmatpush1.bf16.msra.mxu0 0
        %589 = vmatprep.subr.bf16.mxu0 0
        %590 = vmatpush1.bf16.msra.mxu0 0
        %591 = vmatprep.subr.bf16.mxu0 0
        %592 = vmatpush1.bf16.msra.mxu0 0
        %593 = vmatprep.subr.bf16.mxu0 0
        %594 = vmatpush1.bf16.msra.mxu0 0
        %595 = vmatprep.subr.bf16.mxu0 0
        %596 = vmatpush1.bf16.msra.mxu0 0
        %597 = vmatprep.mubr.bf16.mxu0 0
        %598 = vmatmul.mubr.bf16.gmra.mrb[0].mxu0 %v560
        %v599 = vpop.f32.mrb[0].mxu0
        %v600 = vadd.f32 %v531, %v599
        %v601 = vpop.f32.mrb[0].mxu0
        %v602 = vadd.f32 %v531, %v601
        %v603 = vpop.f32.mrb[0].mxu0
        %v604 = vadd.f32 %v536, %v603
        %v605 = vpop.f32.mrb[0].mxu0
        %v606 = vadd.f32 %v536, %v605
        %607 = vmatprep.mubr.bf16.mxu0 0
        %608 = vmatmul.mubr.bf16.gmra.mrb[0].mxu0 %v563
        %v609 = vpop.f32.mrb[0].mxu0
        %v610 = vadd.f32 %v541, %v609
        %v611 = vpop.f32.mrb[0].mxu0
        %v612 = vadd.f32 %v541, %v611
        %v613 = vpop.f32.mrb[0].mxu0
        %v614 = vadd.f32 %v546, %v613
        %v615 = vpop.f32.mrb[0].mxu0
        %v616 = vadd.f32 %v546, %v615
        %617 = vdwg.mxu0
        %v618 = vmax.f32 %v600, 0.0
        %v619 = vmax.f32 %v602, 0.0
        %v620 = vmax.f32 %v604, 0.0
        %v621 = vmax.f32 %v606, 0.0
        %v622 = vmax.f32 %v610, 0.0
        %v623 = vmax.f32 %v612, 0.0
        %v624 = vmax.f32 %v614, 0.0
        %v625 = vmax.f32 %v616, 0.0
        %s626 = scalar_lea.vmem %s2, 16
        %v627 = vld [vmem:[%s626] sm:$0xf]
        %v628 = vld [vmem:[%s626 + $0x4] sm:$0xf]
        %v629 = vld [vmem:[%s626 + $0x8] sm:$0xf]
        %v630 = vld [vmem:[%s626 + $0xc] sm:$0xf]
        %v631 = vpack.c.bf16 %v620, %v618
        %v632 = vpack.c.bf16 %v621, %v619
        %v633 = vpack.c.bf16 %v624, %v622
        %v634 = vpack.c.bf16 %v625, %v623
        %s635 = scalar_lea.vmem %s6, 32
        %v636 = vld [vmem:[%s635] sm:$0xff]
        %v637 = vld [vmem:[%s635 + $0x8] sm:$0xff]
        %v638 = vld [vmem:[%s635 + $0x10] sm:$0xff]
        %v639 = vld [vmem:[%s635 + $0x18] sm:$0xff]
        %641 = vset.pattern.permute.xlu0 0
        %642 = vperm.xlu0 %641, %v636
        %v643 = vpop.permute.xlu0 %642
        %646 = vset.pattern.permute.xlu0 0
        %647 = vperm.xlu0 %646, %v637
        %v648 = vpop.permute.xlu0 %647
        %651 = vset.pattern.permute.xlu0 0
        %652 = vperm.xlu0 %651, %v638
        %v653 = vpop.permute.xlu0 %652
        %656 = vset.pattern.permute.xlu0 0
        %657 = vperm.xlu0 %656, %v639
        %v658 = vpop.permute.xlu0 %657
        %v664 = vunpack.c.l.b16 %v627
        %v665 = vunpack.c.l.b16 %v628
        %v666 = vunpack.c.l.b16 %v629
        %v667 = vunpack.c.l.b16 %v630
        %v668 = vpack.c.b16 %v665, %v664
        %v669 = vpack.c.b16 %v667, %v666
        %v671 = vsel %vm558, %v668, 0
        %v674 = vsel %vm558, %v669, 0
        %676 = vmatprep.subr.bf16.mxu0 %v632
        %677 = vmatpush1.bf16.msra.mxu0 %v631
        %678 = vmatprep.subr.bf16.mxu0 %v634
        %679 = vmatpush1.bf16.msra.mxu0 %v633
        %680 = vmatprep.subr.bf16.mxu0 0
        %681 = vmatpush1.bf16.msra.mxu0 0
        %682 = vmatprep.subr.bf16.mxu0 0
        %683 = vmatpush1.bf16.msra.mxu0 0
        %684 = vmatprep.subr.bf16.mxu0 0
        %685 = vmatpush1.bf16.msra.mxu0 0
        %686 = vmatprep.subr.bf16.mxu0 0
        %687 = vmatpush1.bf16.msra.mxu0 0
        %688 = vmatprep.subr.bf16.mxu0 0
        %689 = vmatpush1.bf16.msra.mxu0 0
        %690 = vmatprep.subr.bf16.mxu0 0
        %691 = vmatpush1.bf16.msra.mxu0 0
        %692 = vmatprep.subr.bf16.mxu0 0
        %693 = vmatpush1.bf16.msra.mxu0 0
        %694 = vmatprep.subr.bf16.mxu0 0
        %695 = vmatpush1.bf16.msra.mxu0 0
        %696 = vmatprep.subr.bf16.mxu0 0
        %697 = vmatpush1.bf16.msra.mxu0 0
        %698 = vmatprep.subr.bf16.mxu0 0
        %699 = vmatpush1.bf16.msra.mxu0 0
        %700 = vmatprep.subr.bf16.mxu0 0
        %701 = vmatpush1.bf16.msra.mxu0 0
        %702 = vmatprep.subr.bf16.mxu0 0
        %703 = vmatpush1.bf16.msra.mxu0 0
        %704 = vmatprep.subr.bf16.mxu0 0
        %705 = vmatpush1.bf16.msra.mxu0 0
        %706 = vmatprep.subr.bf16.mxu0 0
        %707 = vmatpush1.bf16.msra.mxu0 0
        %708 = vmatprep.mubr.bf16.mxu0 0
        %709 = vmatmul.mubr.bf16.gmra.mrb[0].mxu0 %v671
        %v710 = vpop.f32.mrb[0].mxu0
        %v711 = vadd.f32 %v643, %v710
        %v712 = vpop.f32.mrb[0].mxu0
        %v713 = vadd.f32 %v643, %v712
        %v714 = vpop.f32.mrb[0].mxu0
        %v715 = vadd.f32 %v648, %v714
        %v716 = vpop.f32.mrb[0].mxu0
        %v717 = vadd.f32 %v648, %v716
        %718 = vmatprep.mubr.bf16.mxu0 0
        %719 = vmatmul.mubr.bf16.gmra.mrb[0].mxu0 %v674
        %v720 = vpop.f32.mrb[0].mxu0
        %v721 = vadd.f32 %v653, %v720
        %v722 = vpop.f32.mrb[0].mxu0
        %v723 = vadd.f32 %v653, %v722
        %v724 = vpop.f32.mrb[0].mxu0
        %v725 = vadd.f32 %v658, %v724
        %v726 = vpop.f32.mrb[0].mxu0
        %v727 = vadd.f32 %v658, %v726
        %728 = vdwg.mxu0
        %v729 = vmax.f32 %v711, 0.0
        %v730 = vmax.f32 %v713, 0.0
        %v731 = vmax.f32 %v715, 0.0
        %v732 = vmax.f32 %v717, 0.0
        %v733 = vmax.f32 %v721, 0.0
        %v734 = vmax.f32 %v723, 0.0
        %v735 = vmax.f32 %v725, 0.0
        %v736 = vmax.f32 %v727, 0.0
        %s737 = scalar_lea.vmem %s2, 32
        %v738 = vld [vmem:[%s737] sm:$0xf]
        %v739 = vld [vmem:[%s737 + $0x4] sm:$0xf]
        %v740 = vld [vmem:[%s737 + $0x8] sm:$0xf]
        %v741 = vld [vmem:[%s737 + $0xc] sm:$0xf]
        %v742 = vpack.c.bf16 %v731, %v729
        %v743 = vpack.c.bf16 %v732, %v730
        %v744 = vpack.c.bf16 %v735, %v733
        %v745 = vpack.c.bf16 %v736, %v734
        %s746 = scalar_lea.vmem %s6, 64
        %v747 = vld [vmem:[%s746] sm:$0xff]
        %v748 = vld [vmem:[%s746 + $0x8] sm:$0xff]
        %v749 = vld [vmem:[%s746 + $0x10] sm:$0xff]
        %v750 = vld [vmem:[%s746 + $0x18] sm:$0xff]
        %752 = vset.pattern.permute.xlu0 0
        %753 = vperm.xlu0 %752, %v747
        %v754 = vpop.permute.xlu0 %753
        %757 = vset.pattern.permute.xlu0 0
        %758 = vperm.xlu0 %757, %v748
        %v759 = vpop.permute.xlu0 %758
        %762 = vset.pattern.permute.xlu0 0
        %763 = vperm.xlu0 %762, %v749
        %v764 = vpop.permute.xlu0 %763
        %767 = vset.pattern.permute.xlu0 0
        %768 = vperm.xlu0 %767, %v750
        %v769 = vpop.permute.xlu0 %768
        %v775 = vunpack.c.l.b16 %v738
        %v776 = vunpack.c.l.b16 %v739
        %v777 = vunpack.c.l.b16 %v740
        %v778 = vunpack.c.l.b16 %v741
        %v779 = vpack.c.b16 %v776, %v775
        %v780 = vpack.c.b16 %v778, %v777
        %v782 = vsel %vm558, %v779, 0
        %v785 = vsel %vm558, %v780, 0
        %787 = vmatprep.subr.bf16.mxu0 %v743
        %788 = vmatpush1.bf16.msra.mxu0 %v742
        %789 = vmatprep.subr.bf16.mxu0 %v745
        %790 = vmatpush1.bf16.msra.mxu0 %v744
        %791 = vmatprep.subr.bf16.mxu0 0
        %792 = vmatpush1.bf16.msra.mxu0 0
        %793 = vmatprep.subr.bf16.mxu0 0
        %794 = vmatpush1.bf16.msra.mxu0 0
        %795 = vmatprep.subr.bf16.mxu0 0
        %796 = vmatpush1.bf16.msra.mxu0 0
        %797 = vmatprep.subr.bf16.mxu0 0
        %798 = vmatpush1.bf16.msra.mxu0 0
        %799 = vmatprep.subr.bf16.mxu0 0
        %800 = vmatpush1.bf16.msra.mxu0 0
        %801 = vmatprep.subr.bf16.mxu0 0
        %802 = vmatpush1.bf16.msra.mxu0 0
        %803 = vmatprep.subr.bf16.mxu0 0
        %804 = vmatpush1.bf16.msra.mxu0 0
        %805 = vmatprep.subr.bf16.mxu0 0
        %806 = vmatpush1.bf16.msra.mxu0 0
        %807 = vmatprep.subr.bf16.mxu0 0
        %808 = vmatpush1.bf16.msra.mxu0 0
        %809 = vmatprep.subr.bf16.mxu0 0
        %810 = vmatpush1.bf16.msra.mxu0 0
        %811 = vmatprep.subr.bf16.mxu0 0
        %812 = vmatpush1.bf16.msra.mxu0 0
        %813 = vmatprep.subr.bf16.mxu0 0
        %814 = vmatpush1.bf16.msra.mxu0 0
        %815 = vmatprep.subr.bf16.mxu0 0
        %816 = vmatpush1.bf16.msra.mxu0 0
        %817 = vmatprep.subr.bf16.mxu0 0
        %818 = vmatpush1.bf16.msra.mxu0 0
        %819 = vmatprep.mubr.bf16.mxu0 0
        %820 = vmatmul.mubr.bf16.gmra.mrb[0].mxu0 %v782
        %v821 = vpop.f32.mrb[0].mxu0
        %v822 = vadd.f32 %v754, %v821
        %v823 = vpop.f32.mrb[0].mxu0
        %v824 = vadd.f32 %v754, %v823
        %v825 = vpop.f32.mrb[0].mxu0
        %v826 = vadd.f32 %v759, %v825
        %v827 = vpop.f32.mrb[0].mxu0
        %v828 = vadd.f32 %v759, %v827
        %829 = vmatprep.mubr.bf16.mxu0 0
        %830 = vmatmul.mubr.bf16.gmra.mrb[0].mxu0 %v785
        %v831 = vpop.f32.mrb[0].mxu0
        %v832 = vadd.f32 %v764, %v831
        %v833 = vpop.f32.mrb[0].mxu0
        %v834 = vadd.f32 %v764, %v833
        %v835 = vpop.f32.mrb[0].mxu0
        %v836 = vadd.f32 %v769, %v835
        %v837 = vpop.f32.mrb[0].mxu0
        %v838 = vadd.f32 %v769, %v837
        %839 = vdwg.mxu0
        %v840 = vmax.f32 %v822, 0.0
        %v841 = vmax.f32 %v824, 0.0
        %v842 = vmax.f32 %v826, 0.0
        %v843 = vmax.f32 %v828, 0.0
        %v844 = vmax.f32 %v832, 0.0
        %v845 = vmax.f32 %v834, 0.0
        %v846 = vmax.f32 %v836, 0.0
        %v847 = vmax.f32 %v838, 0.0
        %v848 = vpack.c.bf16 %v842, %v840
        %v849 = vpack.c.bf16 %v843, %v841
        %v850 = vpack.c.bf16 %v846, %v844
        %v851 = vpack.c.bf16 %v847, %v845
        %v852 = vld [vmem:[%s3] sm:$0xf]
        %v853 = vld [vmem:[%s3 + $0x4] sm:$0xf]
        %v854 = vld [vmem:[%s7] sm:$0xff]
        %v855 = vld [vmem:[%s7 + $0x8] sm:$0xff]
        %857 = vset.pattern.permute.xlu0 0
        %858 = vperm.xlu0 %857, %v854
        %v859 = vpop.permute.xlu0 %858
        %862 = vset.pattern.permute.xlu0 0
        %863 = vperm.xlu0 %862, %v855
        %v864 = vpop.permute.xlu0 %863
        %v868 = vunpack.c.l.b16 %v852
        %v869 = vunpack.c.l.b16 %v853
        %v870 = vpack.c.b16 %v869, %v868
        %v872 = vsel %vm558, %v870, 0
        %874 = vmatprep.subr.bf16.mxu0 %v849
        %875 = vmatpush1.bf16.msra.mxu0 %v848
        %876 = vmatprep.subr.bf16.mxu0 %v851
        %877 = vmatpush1.bf16.msra.mxu0 %v850
        %878 = vmatprep.subr.bf16.mxu0 0
        %879 = vmatpush1.bf16.msra.mxu0 0
        %880 = vmatprep.subr.bf16.mxu0 0
        %881 = vmatpush1.bf16.msra.mxu0 0
        %882 = vmatprep.subr.bf16.mxu0 0
        %883 = vmatpush1.bf16.msra.mxu0 0
        %884 = vmatprep.subr.bf16.mxu0 0
        %885 = vmatpush1.bf16.msra.mxu0 0
        %886 = vmatprep.subr.bf16.mxu0 0
        %887 = vmatpush1.bf16.msra.mxu0 0
        %888 = vmatprep.subr.bf16.mxu0 0
        %889 = vmatpush1.bf16.msra.mxu0 0
        %890 = vmatprep.subr.bf16.mxu0 0
        %891 = vmatpush1.bf16.msra.mxu0 0
        %892 = vmatprep.subr.bf16.mxu0 0
        %893 = vmatpush1.bf16.msra.mxu0 0
        %894 = vmatprep.subr.bf16.mxu0 0
        %895 = vmatpush1.bf16.msra.mxu0 0
        %896 = vmatprep.subr.bf16.mxu0 0
        %897 = vmatpush1.bf16.msra.mxu0 0
        %898 = vmatprep.subr.bf16.mxu0 0
        %899 = vmatpush1.bf16.msra.mxu0 0
        %900 = vmatprep.subr.bf16.mxu0 0
        %901 = vmatpush1.bf16.msra.mxu0 0
        %902 = vmatprep.subr.bf16.mxu0 0
        %903 = vmatpush1.bf16.msra.mxu0 0
        %904 = vmatprep.subr.bf16.mxu0 0
        %905 = vmatpush1.bf16.msra.mxu0 0
        %906 = vmatprep.mubr.bf16.mxu0 0
        %907 = vmatmul.mubr.bf16.gmra.mrb[0].mxu0 %v872
        %v908 = vpop.f32.mrb[0].mxu0
        %v909 = vadd.f32 %v859, %v908
        %v910 = vpop.f32.mrb[0].mxu0
        %v911 = vadd.f32 %v859, %v910
        %v912 = vpop.f32.mrb[0].mxu0
        %v913 = vadd.f32 %v864, %v912
        %v914 = vpop.f32.mrb[0].mxu0
        %v915 = vadd.f32 %v864, %v914
        %916 = vdwg.mxu0
        %v917 = vld [vmem:[%s4] sm:$0xf]
        %v918 = vld [vmem:[%s4 + $0x4] sm:$0xf]
        %v919 = vld [vmem:[%s8] sm:$0xff]
        %v920 = vld [vmem:[%s8 + $0x8] sm:$0xff]
        %922 = vset.pattern.permute.xlu0 0
        %923 = vperm.xlu0 %922, %v919
        %v924 = vpop.permute.xlu0 %923
        %927 = vset.pattern.permute.xlu0 0
        %928 = vperm.xlu0 %927, %v920
        %v929 = vpop.permute.xlu0 %928
        %v933 = vunpack.c.l.b16 %v917
        %v934 = vunpack.c.l.b16 %v918
        %v935 = vpack.c.b16 %v934, %v933
        %v937 = vsel %vm558, %v935, 0
        %939 = vmatprep.subr.bf16.mxu0 %v849
        %940 = vmatpush1.bf16.msra.mxu0 %v848
        %941 = vmatprep.subr.bf16.mxu0 %v851
        %942 = vmatpush1.bf16.msra.mxu0 %v850
        %943 = vmatprep.subr.bf16.mxu0 0
        %944 = vmatpush1.bf16.msra.mxu0 0
        %945 = vmatprep.subr.bf16.mxu0 0
        %946 = vmatpush1.bf16.msra.mxu0 0
        %947 = vmatprep.subr.bf16.mxu0 0
        %948 = vmatpush1.bf16.msra.mxu0 0
        %949 = vmatprep.subr.bf16.mxu0 0
        %950 = vmatpush1.bf16.msra.mxu0 0
        %951 = vmatprep.subr.bf16.mxu0 0
        %952 = vmatpush1.bf16.msra.mxu0 0
        %953 = vmatprep.subr.bf16.mxu0 0
        %954 = vmatpush1.bf16.msra.mxu0 0
        %955 = vmatprep.subr.bf16.mxu0 0
        %956 = vmatpush1.bf16.msra.mxu0 0
        %957 = vmatprep.subr.bf16.mxu0 0
        %958 = vmatpush1.bf16.msra.mxu0 0
        %959 = vmatprep.subr.bf16.mxu0 0
        %960 = vmatpush1.bf16.msra.mxu0 0
        %961 = vmatprep.subr.bf16.mxu0 0
        %962 = vmatpush1.bf16.msra.mxu0 0
        %963 = vmatprep.subr.bf16.mxu0 0
        %964 = vmatpush1.bf16.msra.mxu0 0
        %965 = vmatprep.subr.bf16.mxu0 0
        %966 = vmatpush1.bf16.msra.mxu0 0
        %967 = vmatprep.subr.bf16.mxu0 0
        %968 = vmatpush1.bf16.msra.mxu0 0
        %969 = vmatprep.subr.bf16.mxu0 0
        %970 = vmatpush1.bf16.msra.mxu0 0
        %971 = vmatprep.mubr.bf16.mxu0 0
        %972 = vmatmul.mubr.bf16.gmra.mrb[0].mxu0 %v937
        %v973 = vpop.f32.mrb[0].mxu0
        %v974 = vadd.f32 %v924, %v973
        %v975 = vpop.f32.mrb[0].mxu0
        %v976 = vadd.f32 %v924, %v975
        %v977 = vpop.f32.mrb[0].mxu0
        %v978 = vadd.f32 %v929, %v977
        %v979 = vpop.f32.mrb[0].mxu0
        %v980 = vadd.f32 %v929, %v979
        %981 = vdwg.mxu0
        %v982 = vsub.f32 %v404, %v909
        %v983 = vsub.f32 %v405, %v911
        %v984 = vsub.f32 %v406, %v913
        %v985 = vsub.f32 %v407, %v915
        %986 = vst [vmem:[%s383] sm:$0xff] %v982
        %987 = vst [vmem:[%s383 + $0x8] sm:$0xff] %v983
        %988 = vst [vmem:[%s383 + $0x10] sm:$0xff] %v984
        %989 = vst [vmem:[%s383 + $0x18] sm:$0xff] %v985
        %990 = vst [vmem:[%s390] sm:$0xff] %v974
        %991 = vst [vmem:[%s390 + $0x8] sm:$0xff] %v976
        %992 = vst [vmem:[%s390 + $0x10] sm:$0xff] %v978
        %993 = vst [vmem:[%s390 + $0x18] sm:$0xff] %v980
        %s994 = sand.u32 %s246, 1
        %s995 = scalar_lea.sflag [#allocation3], %s994
        %s996 = sand.u32 %s246, 1
        %s997 = smul.addr %s996, 32
        %s998 = scalar_lea.vmem [#allocation2], %s997
        %s999 = sand.u32 %s274, 1
        %s1000 = scalar_lea.sflag [#allocation5], %s999
        %s1001 = sand.u32 %s274, 1
        %s1002 = smul.addr %s1001, 32
        %s1003 = scalar_lea.vmem [#allocation4], %s1002
        // Predicated region
        $region57: #{tpu_custom_call.1} parent=55 // pred_check
          %p1004 = pneg %p256
        $region58: #{tpu_custom_call.1} parent=55 // pred_check_branch
          %1006 = sbr.rel (%p1004) target = $region60
        $region59: #{tpu_custom_call.1} parent=55 // pred_region
          %s1007 = smul.u32 2, %s33
          %s1009 = ssub.s32 512, 512
          %1010 = vsyncadd %s995, %s1009
          %s1011 = smul.addr %s32, 4
          %s1012 = sadd.s32 %s1007, %s1011
          %s1013 = smul.addr %s1012, 128
          %s1014 = scalar_lea.hbm %s9, %s1013
          %s1015 = sshll.u32 %s998, 4
          %s1016 = int_to_ptr.vmem [resolvable:$true] %s1015
          %1021 = dma.vmem_to_hbm [thread:$0]  %s1016, 512, %s1014, %s995, 256, 256, 16
        $region60: #{tpu_custom_call.1} parent=55 // pred_fallthru
          _
        // Predicated region
        $region61: #{tpu_custom_call.1} parent=55 // pred_check
          %p1022 = pneg %p284
        $region62: #{tpu_custom_call.1} parent=55 // pred_check_branch
          %1024 = sbr.rel (%p1022) target = $region64
        $region63: #{tpu_custom_call.1} parent=55 // pred_region
          %s1025 = smul.u32 2, %s33
          %s1027 = ssub.s32 512, 512
          %1028 = vsyncadd %s1000, %s1027
          %s1029 = smul.addr %s32, 4
          %s1030 = sadd.s32 %s1025, %s1029
          %s1031 = smul.addr %s1030, 128
          %s1032 = scalar_lea.hbm %s10, %s1031
          %s1033 = sshll.u32 %s1003, 4
          %s1034 = int_to_ptr.vmem [resolvable:$true] %s1033
          %1039 = dma.vmem_to_hbm [thread:$0]  %s1034, 512, %s1032, %s1000, 256, 256, 16
        $region64: #{tpu_custom_call.1} parent=55 // pred_fallthru
          _
      $region56: #{tpu_custom_call.1} parent=5 // pred_fallthru
        _
      %p1040 = scmp.le.s32.totalorder 2, %s23
      // Predicated region
      $region65: #{tpu_custom_call.1} parent=5 // pred_check
        %p1041 = pneg %p1040
      $region66: #{tpu_custom_call.1} parent=5 // pred_check_branch
        %1043 = sbr.rel (%p1041) target = $region68
      $region67: #{tpu_custom_call.1} parent=5 // pred_region
        %s1044 = ssub.s32 %s23, 2
        // Predicated region
        $region69: #{tpu_custom_call.1} parent=67 // pred_check
          %p1045 = pneg %p262
        $region70: #{tpu_custom_call.1} parent=67 // pred_check_branch
          %1047 = sbr.rel (%p1045) target = $region72
        $region71: #{tpu_custom_call.1} parent=67 // pred_region
          %s1048 = sand.u32 %s247, 1
          %s1049 = scalar_lea.sflag [#allocation3], %s1048
          %s1050 = sand.u32 %s247, 1
          %s1051 = smul.addr %s1050, 32
          %s1052 = scalar_lea.vmem [#allocation2], %s1051
          %1053 = dma.done %s1049, 512
        $region72: #{tpu_custom_call.1} parent=67 // pred_fallthru
          _
        // Predicated region
        $region73: #{tpu_custom_call.1} parent=67 // pred_check
          %p1054 = pneg %p290
        $region74: #{tpu_custom_call.1} parent=67 // pred_check_branch
          %1056 = sbr.rel (%p1054) target = $region76
        $region75: #{tpu_custom_call.1} parent=67 // pred_region
          %s1057 = sand.u32 %s275, 1
          %s1058 = scalar_lea.sflag [#allocation5], %s1057
          %s1059 = sand.u32 %s275, 1
          %s1060 = smul.addr %s1059, 32
          %s1061 = scalar_lea.vmem [#allocation4], %s1060
          %1062 = dma.done %s1058, 512
        $region76: #{tpu_custom_call.1} parent=67 // pred_fallthru
          _
      $region68: #{tpu_custom_call.1} parent=5 // pred_fallthru
        _
    $region6: #{tpu_custom_call.1} parent=1 // loop_footer
      %s27 = sadd.s32 1, %s23
    $region7: #{tpu_custom_call.1} parent=1 // loop_footer_branch
      %22 = sbr.rel target = $region3
    $region8: #{tpu_custom_call.1} parent=1 // loop_exit
      _
    %1063 = vsyncpa [#allocation3], 1
    %s1064 = scalar_lea.sflag [#allocation3], 1
    %1065 = vsyncpa %s1064, 1
    %1066 = vsyncpa [#allocation5], 1
    %s1067 = scalar_lea.sflag [#allocation5], 1
    %1068 = vsyncpa %s1067, 1

</llo_original>
